<compile_context>
chip_gen: v7x
topology: tpu7x:2x2x1
jax: 0.10.0
libtpu: 0.0.40
codegen_flags: <defaults>
</compile_context>

<pallas_src>
import jax
import jax.numpy as jnp
from jax.experimental import pallas as pl
from jax.experimental.pallas import tpu as pltpu

S, D_IN, HID, D_OUT = 8, 32, 64, 16


def ffn_ctx_kernel(x_ref, w1_ref, w2_ref, bias_ref, mi_ref, out_ref):
    hid = w1_ref.shape[1]
    d_out = w2_ref.shape[1]

    x = x_ref[...]                                                    # (blk, D_in)
    h = jnp.dot(x, w1_ref[...], preferred_element_type=jnp.float32)   # MXU
    h = jnp.maximum(h + bias_ref[0:1, :hid], 0.0)                     # +b1, ReLU
    y = jnp.dot(h, w2_ref[...], preferred_element_type=jnp.float32)   # MXU
    y = jax.nn.sigmoid(y + bias_ref[1:2, :d_out])                     # +b2, Sigmoid

    keep = mi_ref[:, 0:1]   # 1.0 keep / 0.0 zero-row, broadcasts over lanes
    ind = mi_ref[:, 1:2]    # (binary_seq == 2) indicator column
    out_ref[:, :d_out] = y * keep     # masked rows -> 0 with a single vmul
    out_ref[:, d_out:] = ind          # fused concat: last lane of the output


def feedforward_contextual(inp, binary_seq, params, block_rows=256):
    w1, b1, w2, b2 = params
    s, d_in = inp.shape
    hid = w1.shape[1]
    d_out = w2.shape[1]
    width = max(hid, d_out)

    # Pack both biases into a single operand (fewer tiny DMA descriptors).
    bias_pack = jnp.stack(
        [jnp.pad(b1.astype(jnp.float32), (0, width - hid)),
         jnp.pad(b2.astype(jnp.float32), (0, width - d_out))], axis=0)  # (2, W)

    # Precompute float keep-mask and indicator once; one (S, 2) operand.
    zero_rows = (binary_seq == -1) | (binary_seq == 2)
    mask_ind = jnp.stack(
        [1.0 - zero_rows.astype(jnp.float32),
         (binary_seq == 2).astype(jnp.float32)], axis=-1)               # (S, 2)

    # Row tiling: full array when small, 256-row "parallel" tiles when big
    # (fits v7x's 64 MiB VMEM budget; weights stay resident across steps).
    blk = s if s <= block_rows else block_rows
    s_pad = pl.cdiv(s, blk) * blk
    if s_pad != s:
        inp = jnp.pad(inp, ((0, s_pad - s), (0, 0)))
        mask_ind = jnp.pad(mask_ind, ((0, s_pad - s), (0, 0)))

    out = pl.pallas_call(
        ffn_ctx_kernel,
        grid=(s_pad // blk,),
        in_specs=[
            pl.BlockSpec((blk, d_in), lambda i: (i, 0)),
            pl.BlockSpec((d_in, hid), lambda i: (0, 0)),   # constant -> VMEM-resident
            pl.BlockSpec((hid, d_out), lambda i: (0, 0)),
            pl.BlockSpec((2, width), lambda i: (0, 0)),
            pl.BlockSpec((blk, 2), lambda i: (i, 0)),
        ],
        out_specs=pl.BlockSpec((blk, d_out + 1), lambda i: (i, 0)),
        out_shape=jax.ShapeDtypeStruct((s_pad, d_out + 1), jnp.float32),
        compiler_params=pltpu.CompilerParams(
            dimension_semantics=("parallel",)),            # engages v7x's 2nd TC
    )(inp, w1, w2, bias_pack, mask_ind)

    return out[:s] if s_pad != s else out


def make_params(key):
    k1, k2, k3, k4 = jax.random.split(key, 4)
    # Deterministic synthetic weights (PyTorch-Linear-like uniform fan-in init).
    w1 = jax.random.uniform(k1, (D_IN, HID), jnp.float32, -1.0, 1.0) / jnp.sqrt(D_IN)
    b1 = jax.random.uniform(k2, (HID,), jnp.float32, -1.0, 1.0) / jnp.sqrt(D_IN)
    w2 = jax.random.uniform(k3, (HID, D_OUT), jnp.float32, -1.0, 1.0) / jnp.sqrt(HID)
    b2 = jax.random.uniform(k4, (D_OUT,), jnp.float32, -1.0, 1.0) / jnp.sqrt(HID)
    return w1, b1, w2, b2


def reference(inp, binary_seq, params):
    w1, b1, w2, b2 = params
    y = jax.nn.sigmoid(jnp.maximum(inp @ w1 + b1, 0.0) @ w2 + b2)
    mask = (binary_seq == -1) | (binary_seq == 2)
    y = jnp.where(mask[:, None], 0.0, y)
    return jnp.concatenate([y, (binary_seq == 2).astype(jnp.float32)[:, None]], axis=-1)


if __name__ == "__main__":
    key = jax.random.PRNGKey(0)
    kx, kp = jax.random.split(key)
    inp = jax.random.normal(kx, (S, D_IN), jnp.float32)
    binary_seq = jnp.array([0, 1, -1, 2, 0, 2, 1, -1], dtype=jnp.int32)
    params = make_params(kp)

    out = feedforward_contextual(inp, binary_seq, params)
    out = jax.block_until_ready(out)

    ref = reference(inp, binary_seq, params)
    assert out.shape == (S, D_OUT + 1), out.shape
    assert jnp.allclose(out, ref, atol=1e-5, rtol=1e-5)
    print("KERNEL_OK")
</pallas_src>

<mosaic_0001>
module attributes {stable_mosaic.version = 11 : i64} {
  func.func @ffn_ctx_kernel(%arg0: i32, %arg1: memref<8x32xf32, #tpu.memory_space<vmem>>, %arg2: memref<32x64xf32, #tpu.memory_space<vmem>>, %arg3: memref<64x16xf32, #tpu.memory_space<vmem>>, %arg4: memref<2x64xf32, #tpu.memory_space<vmem>>, %arg5: memref<8x2xf32, #tpu.memory_space<vmem>>, %arg6: memref<8x17xf32, #tpu.memory_space<vmem>>) attributes {dimension_semantics = [#tpu.dimension_semantics<parallel>], iteration_bounds = array<i64: 1>, scalar_prefetch = 0 : i64, scratch_operands = 0 : i64, tpu.core_type = #tpu.core_type<tc>, window_params = [{transform_indices = @transform_0, window_bounds = array<i64: 8, 32>}, {pipeline_mode = #tpu.pipeline_mode<synchronous>, transform_indices = @transform_1, window_bounds = array<i64: 32, 64>}, {pipeline_mode = #tpu.pipeline_mode<synchronous>, transform_indices = @transform_2, window_bounds = array<i64: 64, 16>}, {pipeline_mode = #tpu.pipeline_mode<synchronous>, transform_indices = @transform_3, window_bounds = array<i64: 2, 64>}, {transform_indices = @transform_4, window_bounds = array<i64: 8, 2>}, {transform_indices = @transform_5, window_bounds = array<i64: 8, 17>}]} {
    %c0 = arith.constant 0 : index
    %c0_0 = arith.constant 0 : index
    %0 = vector.load %arg1[%c0, %c0_0] : memref<8x32xf32, #tpu.memory_space<vmem>>, vector<8x32xf32>
    %c0_1 = arith.constant 0 : index
    %c0_2 = arith.constant 0 : index
    %1 = vector.load %arg2[%c0_1, %c0_2] : memref<32x64xf32, #tpu.memory_space<vmem>>, vector<32x64xf32>
    %cst = arith.constant dense<0.000000e+00> : vector<8x64xf32>
    %2 = tpu.matmul %0, %1, %cst {dimension_numbers = #tpu.dot_dimension_numbers<[1], [0], [0], [1], [0, 0, 1, 1], [], []>} : vector<8x32xf32>, vector<32x64xf32>, vector<8x64xf32> -> vector<8x64xf32>
    %c0_3 = arith.constant 0 : index
    %c0_4 = arith.constant 0 : index
    %3 = vector.load %arg4[%c0_3, %c0_4] : memref<2x64xf32, #tpu.memory_space<vmem>>, vector<1x64xf32>
    %4 = vector.broadcast %3 : vector<1x64xf32> to vector<8x64xf32>
    %5 = arith.addf %2, %4 : vector<8x64xf32>
    %cst_5 = arith.constant 0.000000e+00 : f32
    %6 = vector.broadcast %cst_5 : f32 to vector<8x64xf32>
    %7 = arith.maximumf %5, %6 : vector<8x64xf32>
    %c0_6 = arith.constant 0 : index
    %c0_7 = arith.constant 0 : index
    %8 = vector.load %arg3[%c0_6, %c0_7] : memref<64x16xf32, #tpu.memory_space<vmem>>, vector<64x16xf32>
    %cst_8 = arith.constant dense<0.000000e+00> : vector<8x16xf32>
    %9 = tpu.matmul %7, %8, %cst_8 {dimension_numbers = #tpu.dot_dimension_numbers<[1], [0], [0], [1], [0, 0, 1, 1], [], []>} : vector<8x64xf32>, vector<64x16xf32>, vector<8x16xf32> -> vector<8x16xf32>
    %c1 = arith.constant 1 : index
    %c0_9 = arith.constant 0 : index
    %10 = vector.load %arg4[%c1, %c0_9] : memref<2x64xf32, #tpu.memory_space<vmem>>, vector<1x16xf32>
    %11 = vector.broadcast %10 : vector<1x16xf32> to vector<8x16xf32>
    %12 = arith.addf %9, %11 : vector<8x16xf32>
    %13 = arith.negf %12 : vector<8x16xf32>
    %14 = math.exp %13 : vector<8x16xf32>
    %cst_10 = arith.constant 1.000000e+00 : f32
    %15 = vector.broadcast %cst_10 : f32 to vector<8x16xf32>
    %16 = arith.addf %15, %14 : vector<8x16xf32>
    %17 = arith.divf %15, %16 : vector<8x16xf32>
    %c0_11 = arith.constant 0 : index
    %c0_12 = arith.constant 0 : index
    %18 = vector.load %arg5[%c0_11, %c0_12] : memref<8x2xf32, #tpu.memory_space<vmem>>, vector<8x1xf32>
    %c0_13 = arith.constant 0 : index
    %c1_14 = arith.constant 1 : index
    %19 = vector.load %arg5[%c0_13, %c1_14] : memref<8x2xf32, #tpu.memory_space<vmem>>, vector<8x1xf32>
    %20 = vector.broadcast %18 : vector<8x1xf32> to vector<8x16xf32>
    %21 = arith.mulf %17, %20 : vector<8x16xf32>
    %c0_15 = arith.constant 0 : index
    %c0_16 = arith.constant 0 : index
    %22 = vector.load %arg6[%c0_15, %c0_16] : memref<8x17xf32, #tpu.memory_space<vmem>>, vector<8x16xf32>
    tpu.vector_store %arg6[%c0_15, %c0_16], %21 {strides = array<i32>} : memref<8x17xf32, #tpu.memory_space<vmem>>, vector<8x16xf32>,
    %c0_17 = arith.constant 0 : index
    %c16 = arith.constant 16 : index
    %23 = vector.load %arg6[%c0_17, %c16] : memref<8x17xf32, #tpu.memory_space<vmem>>, vector<8x1xf32>
    tpu.vector_store %arg6[%c0_17, %c16], %19 {strides = array<i32>} : memref<8x17xf32, #tpu.memory_space<vmem>>, vector<8x1xf32>,
    return
  }
  func.func @transform_0(%arg0: i32) -> (i32, i32) {
    %c0_i32 = arith.constant 0 : i32
    %c0_i32_0 = arith.constant 0 : i32
    return %arg0, %c0_i32 : i32, i32
  }
  func.func @transform_1(%arg0: i32) -> (i32, i32) {
    %c0_i32 = arith.constant 0 : i32
    %c0_i32_0 = arith.constant 0 : i32
    %c0_i32_1 = arith.constant 0 : i32
    return %c0_i32, %c0_i32_0 : i32, i32
  }
  func.func @transform_2(%arg0: i32) -> (i32, i32) {
    %c0_i32 = arith.constant 0 : i32
    %c0_i32_0 = arith.constant 0 : i32
    %c0_i32_1 = arith.constant 0 : i32
    return %c0_i32, %c0_i32_0 : i32, i32
  }
  func.func @transform_3(%arg0: i32) -> (i32, i32) {
    %c0_i32 = arith.constant 0 : i32
    %c0_i32_0 = arith.constant 0 : i32
    %c0_i32_1 = arith.constant 0 : i32
    return %c0_i32, %c0_i32_0 : i32, i32
  }
  func.func @transform_4(%arg0: i32) -> (i32, i32) {
    %c0_i32 = arith.constant 0 : i32
    %c0_i32_0 = arith.constant 0 : i32
    return %arg0, %c0_i32 : i32, i32
  }
  func.func @transform_5(%arg0: i32) -> (i32, i32) {
    %c0_i32 = arith.constant 0 : i32
    %c0_i32_0 = arith.constant 0 : i32
    return %arg0, %c0_i32 : i32, i32
  }
}

</mosaic_0001>

<llo_original>
// kernel: tpu_custom_call.1
$region0: #{tpu_custom_call.1}
  #allocation0 [shape = 'u32[]', space=smem, size = 0x4, offset = 0x4, fixed_abs, tag = 'smem constant byte address 0x4 - core index']
  #allocation1 [shape = 'u32[144,128]{1,0:T(1,128)}', space=vmem, size = 0x12000, scoped, tag = 'internal scratch']
  %s0 = inlined_call_operand.vmem [shape: f32[8,32], index: 0, kind: input, shape index: {}]
  %s1 = inlined_call_operand.vmem [shape: f32[32,64], index: 1, kind: input, shape index: {}]
  %s2 = inlined_call_operand.vmem [shape: f32[64,16], index: 2, kind: input, shape index: {}]
  %s3 = inlined_call_operand.vmem [shape: f32[2,64], index: 3, kind: input, shape index: {}]
  %s4 = inlined_call_operand.vmem [shape: f32[8,2], index: 4, kind: input, shape index: {}]
  %s5 = inlined_call_operand.hbm [shape: f32[8,17], index: 5, kind: output, shape index: {}]
  %s6 = sld [smem:[#allocation0]]
  $region30: #{tpu_custom_call.1} parent=0
    _
  %s8 = ssub.s32 1, %s6
  %s9 = scalar_select 0, %s8, %s6
  $region1: #{tpu_custom_call.1} parent=0
    #allocation2 [shape = 'u8[4096]{0}', space=vmem, size = 0x1000, scoped, tag = 'output window, operand 0, single buffered']
    #allocation3 [shape = 's32[1]{0}', space=sflag, size = 0x4, scoped, tag = 'scoped memory for tpu_custom_call.1']
    %10 = vsyncpa [#allocation3], 0
    // Predicated region
    $region2: #{tpu_custom_call.1} parent=1 // pred_check
      _
    $region3: #{tpu_custom_call.1} parent=1 // pred_check_branch
      %12 = sbr.rel (0) target = $region5
    $region4: #{tpu_custom_call.1} parent=1 // pred_region
      _
    $region5: #{tpu_custom_call.1} parent=1 // pred_fallthru
      _
    // Predicated region
    $region6: #{tpu_custom_call.1} parent=1 // pred_check
      _
    $region7: #{tpu_custom_call.1} parent=1 // pred_check_branch
      %14 = sbr.rel (0) target = $region9
    $region8: #{tpu_custom_call.1} parent=1 // pred_region
      _
    $region9: #{tpu_custom_call.1} parent=1 // pred_fallthru
      _
    // Predicated region
    $region10: #{tpu_custom_call.1} parent=1 // pred_check
      _
    $region11: #{tpu_custom_call.1} parent=1 // pred_check_branch
      %16 = sbr.rel (0) target = $region13
    $region12: #{tpu_custom_call.1} parent=1 // pred_region
      _
    $region13: #{tpu_custom_call.1} parent=1 // pred_fallthru
      _
    // Predicated region
    $region14: #{tpu_custom_call.1} parent=1 // pred_check
      _
    $region15: #{tpu_custom_call.1} parent=1 // pred_check_branch
      %18 = sbr.rel (0) target = $region17
    $region16: #{tpu_custom_call.1} parent=1 // pred_region
      _
    $region17: #{tpu_custom_call.1} parent=1 // pred_fallthru
      _
    // Predicated region
    $region18: #{tpu_custom_call.1} parent=1 // pred_check
      _
    $region19: #{tpu_custom_call.1} parent=1 // pred_check_branch
      %20 = sbr.rel (0) target = $region21
    $region20: #{tpu_custom_call.1} parent=1 // pred_region
      _
    $region21: #{tpu_custom_call.1} parent=1 // pred_fallthru
      _
    %v21 = vld [vmem:[%s0] sm:$0xff]
    %v22 = vld [vmem:[%s1] sm:$0xff]
    %v23 = vld [vmem:[%s1 + $0x8] sm:$0xff]
    %v24 = vld [vmem:[%s1 + $0x10] sm:$0xff]
    %v25 = vld [vmem:[%s1 + $0x18] sm:$0xff]
    %v26 = vld [vmem:[%s3] sm:$0x1]
    %v27 = vlaneseq
    %v28 = vshrl.u32 %v27, 7
    %v29 = vsub.s32 0, %v28
    %v30 = vrot.slane %v26, %v29
    %vm31 = vcmask 261120
    %v33 = vsel %vm31, %v21, 0
    %35 = vmatprep.subr.mxu0 0.0
    %36 = vmatpush1.msra.mxu0 %v22
    %37 = vmatprep.subr.mxu0 0.0
    %38 = vmatpush1.msra.mxu0 %v23
    %39 = vmatprep.subr.mxu0 0.0
    %40 = vmatpush1.msra.mxu0 %v24
    %41 = vmatprep.subr.mxu0 0.0
    %42 = vmatpush1.msra.mxu0 %v25
    %43 = vmatprep.subr.mxu0 0.0
    %44 = vmatpush1.msra.mxu0 0.0
    %45 = vmatprep.subr.mxu0 0.0
    %46 = vmatpush1.msra.mxu0 0.0
    %47 = vmatprep.subr.mxu0 0.0
    %48 = vmatpush1.msra.mxu0 0.0
    %49 = vmatprep.subr.mxu0 0.0
    %50 = vmatpush1.msra.mxu0 0.0
    %51 = vmatprep.subr.mxu0 0.0
    %52 = vmatpush1.msra.mxu0 0.0
    %53 = vmatprep.subr.mxu0 0.0
    %54 = vmatpush1.msra.mxu0 0.0
    %55 = vmatprep.subr.mxu0 0.0
    %56 = vmatpush1.msra.mxu0 0.0
    %57 = vmatprep.subr.mxu0 0.0
    %58 = vmatpush1.msra.mxu0 0.0
    %59 = vmatprep.subr.mxu0 0.0
    %60 = vmatpush1.msra.mxu0 0.0
    %61 = vmatprep.subr.mxu0 0.0
    %62 = vmatpush1.msra.mxu0 0.0
    %63 = vmatprep.subr.mxu0 0.0
    %64 = vmatpush1.msra.mxu0 0.0
    %65 = vmatprep.subr.mxu0 0.0
    %66 = vmatpush1.msra.mxu0 0.0
    %67 = vmatprep.subr.mxu0 0.0
    %68 = vmatpush1.msra.mxu0 0.0
    %69 = vmatprep.subr.mxu0 0.0
    %70 = vmatpush1.msra.mxu0 0.0
    %71 = vmatprep.subr.mxu0 0.0
    %72 = vmatpush1.msra.mxu0 0.0
    %73 = vmatprep.subr.mxu0 0.0
    %74 = vmatpush1.msra.mxu0 0.0
    %75 = vmatprep.subr.mxu0 0.0
    %76 = vmatpush1.msra.mxu0 0.0
    %77 = vmatprep.subr.mxu0 0.0
    %78 = vmatpush1.msra.mxu0 0.0
    %79 = vmatprep.subr.mxu0 0.0
    %80 = vmatpush1.msra.mxu0 0.0
    %81 = vmatprep.subr.mxu0 0.0
    %82 = vmatpush1.msra.mxu0 0.0
    %83 = vmatprep.subr.mxu0 0.0
    %84 = vmatpush1.msra.mxu0 0.0
    %85 = vmatprep.subr.mxu0 0.0
    %86 = vmatpush1.msra.mxu0 0.0
    %87 = vmatprep.subr.mxu0 0.0
    %88 = vmatpush1.msra.mxu0 0.0
    %89 = vmatprep.subr.mxu0 0.0
    %90 = vmatpush1.msra.mxu0 0.0
    %91 = vmatprep.subr.mxu0 0.0
    %92 = vmatpush1.msra.mxu0 0.0
    %93 = vmatprep.subr.mxu0 0.0
    %94 = vmatpush1.msra.mxu0 0.0
    %95 = vmatprep.subr.mxu0 0.0
    %96 = vmatpush1.msra.mxu0 0.0
    %97 = vmatprep.subr.mxu0 0.0
    %98 = vmatpush1.msra.mxu0 0.0
    %99 = vmatprep.mubr.f32.mxu0 0.0
    %100 = vmatmul.mubr.f32.gmra.mrb[0].mxu0 %v33
    %v101 = vpop.f32.mrb[0].mxu0
    %v102 = vadd.f32 %v30, %v101
    %v103 = vpop.f32.mrb[0].mxu0
    %104 = vdwg.mxu0
    %v105 = vmax.f32 %v102, 0.0
    %v106 = vld [vmem:[%s2] sm:$0xff]
    %v107 = vld [vmem:[%s2 + $0x8] sm:$0xff]
    %v108 = vld [vmem:[%s2 + $0x10] sm:$0xff]
    %v109 = vld [vmem:[%s2 + $0x18] sm:$0xff]
    %v110 = vld [vmem:[%s2 + $0x20] sm:$0xff]
    %v111 = vld [vmem:[%s2 + $0x28] sm:$0xff]
    %v112 = vld [vmem:[%s2 + $0x30] sm:$0xff]
    %v113 = vld [vmem:[%s2 + $0x38] sm:$0xff]
    %v114 = vld [vmem:[%s3 + $0x1] sm:$0x1]
    %v115 = vlaneseq
    %v116 = vshrl.u32 %v115, 7
    %v117 = vsub.s32 0, %v116
    %v118 = vrot.slane %v114, %v117
    %vm119 = vcmask 523264
    %v121 = vsel %vm119, %v105, 0
    %123 = vmatprep.subr.mxu0 0.0
    %124 = vmatpush1.msra.mxu0 %v106
    %125 = vmatprep.subr.mxu0 0.0
    %126 = vmatpush1.msra.mxu0 %v107
    %127 = vmatprep.subr.mxu0 0.0
    %128 = vmatpush1.msra.mxu0 %v108
    %129 = vmatprep.subr.mxu0 0.0
    %130 = vmatpush1.msra.mxu0 %v109
    %131 = vmatprep.subr.mxu0 0.0
    %132 = vmatpush1.msra.mxu0 %v110
    %133 = vmatprep.subr.mxu0 0.0
    %134 = vmatpush1.msra.mxu0 %v111
    %135 = vmatprep.subr.mxu0 0.0
    %136 = vmatpush1.msra.mxu0 %v112
    %137 = vmatprep.subr.mxu0 0.0
    %138 = vmatpush1.msra.mxu0 %v113
    %139 = vmatprep.subr.mxu0 0.0
    %140 = vmatpush1.msra.mxu0 0.0
    %141 = vmatprep.subr.mxu0 0.0
    %142 = vmatpush1.msra.mxu0 0.0
    %143 = vmatprep.subr.mxu0 0.0
    %144 = vmatpush1.msra.mxu0 0.0
    %145 = vmatprep.subr.mxu0 0.0
    %146 = vmatpush1.msra.mxu0 0.0
    %147 = vmatprep.subr.mxu0 0.0
    %148 = vmatpush1.msra.mxu0 0.0
    %149 = vmatprep.subr.mxu0 0.0
    %150 = vmatpush1.msra.mxu0 0.0
    %151 = vmatprep.subr.mxu0 0.0
    %152 = vmatpush1.msra.mxu0 0.0
    %153 = vmatprep.subr.mxu0 0.0
    %154 = vmatpush1.msra.mxu0 0.0
    %155 = vmatprep.subr.mxu0 0.0
    %156 = vmatpush1.msra.mxu0 0.0
    %157 = vmatprep.subr.mxu0 0.0
    %158 = vmatpush1.msra.mxu0 0.0
    %159 = vmatprep.subr.mxu0 0.0
    %160 = vmatpush1.msra.mxu0 0.0
    %161 = vmatprep.subr.mxu0 0.0
    %162 = vmatpush1.msra.mxu0 0.0
    %163 = vmatprep.subr.mxu0 0.0
    %164 = vmatpush1.msra.mxu0 0.0
    %165 = vmatprep.subr.mxu0 0.0
    %166 = vmatpush1.msra.mxu0 0.0
    %167 = vmatprep.subr.mxu0 0.0
    %168 = vmatpush1.msra.mxu0 0.0
    %169 = vmatprep.subr.mxu0 0.0
    %170 = vmatpush1.msra.mxu0 0.0
    %171 = vmatprep.subr.mxu0 0.0
    %172 = vmatpush1.msra.mxu0 0.0
    %173 = vmatprep.subr.mxu0 0.0
    %174 = vmatpush1.msra.mxu0 0.0
    %175 = vmatprep.subr.mxu0 0.0
    %176 = vmatpush1.msra.mxu0 0.0
    %177 = vmatprep.subr.mxu0 0.0
    %178 = vmatpush1.msra.mxu0 0.0
    %179 = vmatprep.subr.mxu0 0.0
    %180 = vmatpush1.msra.mxu0 0.0
    %181 = vmatprep.subr.mxu0 0.0
    %182 = vmatpush1.msra.mxu0 0.0
    %183 = vmatprep.subr.mxu0 0.0
    %184 = vmatpush1.msra.mxu0 0.0
    %185 = vmatprep.subr.mxu0 0.0
    %186 = vmatpush1.msra.mxu0 0.0
    %187 = vmatprep.mubr.f32.mxu0 0.0
    %188 = vmatmul.mubr.f32.gmra.mrb[0].mxu0 %v121
    %v189 = vpop.f32.mrb[0].mxu0
    %v190 = vadd.f32 %v118, %v189
    %v191 = vpop.f32.mrb[0].mxu0
    %192 = vdwg.mxu0
    %v193 = vxor.u32 %v190, 2147483648
    %v194 = vmul.f32 %v193, 1.442695
    %v195 = vpow.pop %v194
    %v196 = vadd.f32 %v195, 1.0
    %v197 = vrcp.pop %v196
    %v198 = vmul.f32 1.0, %v197
    %v199 = vld [vmem:[%s4] sm:$0xff]
    %201 = vset.pattern.permute.xlu0 0
    %202 = vperm.xlu0 %201, %v199
    %v203 = vpop.permute.xlu0 %202
    %v205 = vmul.f32 %v198, %v203
    %vm206 = vcmask 130048
    %207 = vst.msk [vmem:[#allocation2] sm:$0xff] %vm206, %v205
    %208 = vrot.lane.b32.xlu0 %v199, 15
    %v209 = vpop.permute.xlu0 %208
    %vm211 = vcmask 138368
    %212 = vst.msk [vmem:[#allocation2] sm:$0xff] %vm211, %v209
    // Predicated region
    $region22: #{tpu_custom_call.1} parent=1 // pred_check
      _
    $region23: #{tpu_custom_call.1} parent=1 // pred_check_branch
      %214 = sbr.rel (0) target = $region25
    $region24: #{tpu_custom_call.1} parent=1 // pred_region
      %s216 = ssub.s32 128, 128
      %217 = vsyncadd [#allocation3], %s216
      %s219 = sshll.u32 [#allocation2], 4
      %s220 = int_to_ptr.vmem [resolvable:$true] %s219
      %222 = dma.vmem_to_hbm [thread:$0]  %s220, 128, %s5, [#allocation3]
    $region25: #{tpu_custom_call.1} parent=1 // pred_fallthru
      _
    // Predicated region
    $region26: #{tpu_custom_call.1} parent=1 // pred_check
      _
    $region27: #{tpu_custom_call.1} parent=1 // pred_check_branch
      %224 = sbr.rel (0) target = $region29
    $region28: #{tpu_custom_call.1} parent=1 // pred_region
      %225 = dma.done [#allocation3], 128
    $region29: #{tpu_custom_call.1} parent=1 // pred_fallthru
      _
    %226 = vsyncpa [#allocation3], 1

</llo_original>
